<compile_context>
chip_gen: v5e
topology: v5e:2x2
jax: 0.10.0
libtpu: 0.0.40
codegen_flags: <defaults>
</compile_context>

<pallas_src>
import jax
import jax.numpy as jnp
from jax.experimental import pallas as pl
from jax.experimental.pallas import tpu as pltpu

IN_DIM, HID_DIM, OUT_DIM = 8, 16, 8


def decoder_kernel(x_ref, w1_ref, b1_ref, w2_ref, b2_ref, out_ref):
    x = x_ref[...]                                                  # (TB, 8) f32

    # fc1: 8 -> 16, f32 MXU accumulate, bias + ReLU on the VPU.
    h = jnp.dot(x, w1_ref[...], preferred_element_type=jnp.float32)
    h = jnp.maximum(h + b1_ref[...], 0.0)                           # (TB, 16) f32

    # fc2: 16 -> 8, f32 accumulate, bias add (no activation).
    y = jnp.dot(h, w2_ref[...], preferred_element_type=jnp.float32)
    out_ref[...] = y + b2_ref[...]                                  # (TB, 8) f32


def _round_up(n, m):
    return ((n + m - 1) // m) * m


def decoder_forward(x, params, *, block_batch=512):
    """x: (B, 8). Returns (B, 8) float32."""
    w1, b1, w2, b2 = params
    B = x.shape[0]
    x = x.astype(jnp.float32)

    # Batch tile: multiple of 8 sublanes; small batches collapse to one grid step.
    tb = min(_round_up(block_batch, 8), _round_up(B, 8))
    b_pad = _round_up(B, tb)
    if b_pad != B:
        x = jnp.pad(x, ((0, b_pad - B), (0, 0)))

    vmem = pltpu.MemorySpace.VMEM
    # Weights/biases: full-array blocks with constant index_map -> stay VMEM-resident
    # across all grid steps (no re-DMA).
    resident = lambda shape: pl.BlockSpec(shape, lambda i: (0, 0), memory_space=vmem)

    flops = 2 * b_pad * (IN_DIM * HID_DIM + HID_DIM * OUT_DIM)
    bytes_accessed = (b_pad * (IN_DIM + OUT_DIM) * 4
                      + (IN_DIM * HID_DIM + HID_DIM * OUT_DIM) * 4
                      + (HID_DIM + OUT_DIM) * 4)

    out = pl.pallas_call(
        decoder_kernel,
        out_shape=jax.ShapeDtypeStruct((b_pad, OUT_DIM), jnp.float32),
        grid=(b_pad // tb,),
        in_specs=[
            pl.BlockSpec((tb, IN_DIM), lambda i: (i, 0), memory_space=vmem),
            resident(w1.shape), resident(b1.shape),
            resident(w2.shape), resident(b2.shape),
        ],
        out_specs=pl.BlockSpec((tb, OUT_DIM), lambda i: (i, 0), memory_space=vmem),
        compiler_params=pltpu.CompilerParams(
            dimension_semantics=("parallel",)),
        cost_estimate=pl.CostEstimate(
            flops=flops, transcendentals=0, bytes_accessed=bytes_accessed),
    )(x, w1, b1, w2, b2)
    return out[:B]


def init_params(key):
    """Mimic torch.nn.Linear default init: U[-1/sqrt(fan_in), +1/sqrt(fan_in)].

    Weights stored transposed as (in, out); biases (1, out). All float32.
    """
    def linear(k, fan_in, fan_out):
        kw, kb = jax.random.split(k)
        bound = 1.0 / float(fan_in) ** 0.5
        w = jax.random.uniform(kw, (fan_in, fan_out), jnp.float32, -bound, bound)
        b = jax.random.uniform(kb, (1, fan_out), jnp.float32, -bound, bound)
        return w, b

    k1, k2 = jax.random.split(key)
    w1, b1 = linear(k1, IN_DIM, HID_DIM)    # fc1
    w2, b2 = linear(k2, HID_DIM, OUT_DIM)   # fc2
    return (w1, b1, w2, b2)


def reference_forward(x, params):
    """Pure-JAX f32 reference (matches torch forward numerics)."""
    w1, b1, w2, b2 = params
    x = x.astype(jnp.float32)
    h = jnp.maximum(jnp.dot(x, w1, preferred_element_type=jnp.float32) + b1, 0.0)
    return jnp.dot(h, w2, preferred_element_type=jnp.float32) + b2


if __name__ == "__main__":
    key = jax.random.PRNGKey(0)
    k_params, k_x = jax.random.split(key)

    params = init_params(k_params)
    batch = 8
    x = jax.random.normal(k_x, (batch, IN_DIM), jnp.float32)

    out = decoder_forward(x, params)
    out = jax.block_until_ready(out)

    ref = reference_forward(x, params)
    assert out.shape == (batch, OUT_DIM)
    assert jnp.allclose(out, ref, atol=1e-4, rtol=1e-4), (
        float(jnp.max(jnp.abs(out - ref))))

    print("KERNEL_OK")
</pallas_src>

<mosaic_0001>
module attributes {stable_mosaic.version = 11 : i64} {
  func.func @decoder_kernel(%arg0: i32, %arg1: memref<8x8xf32, #tpu.memory_space<vmem>>, %arg2: memref<8x16xf32, #tpu.memory_space<vmem>>, %arg3: memref<1x16xf32, #tpu.memory_space<vmem>>, %arg4: memref<16x8xf32, #tpu.memory_space<vmem>>, %arg5: memref<1x8xf32, #tpu.memory_space<vmem>>, %arg6: memref<8x8xf32, #tpu.memory_space<vmem>>) attributes {dimension_semantics = [#tpu.dimension_semantics<parallel>], iteration_bounds = array<i64: 1>, scalar_prefetch = 0 : i64, scratch_operands = 0 : i64, tpu.core_type = #tpu.core_type<tc>, window_params = [{transform_indices = @transform_0, window_bounds = array<i64: 8, 8>}, {pipeline_mode = #tpu.pipeline_mode<synchronous>, transform_indices = @transform_1, window_bounds = array<i64: 8, 16>}, {pipeline_mode = #tpu.pipeline_mode<synchronous>, transform_indices = @transform_2, window_bounds = array<i64: 1, 16>}, {pipeline_mode = #tpu.pipeline_mode<synchronous>, transform_indices = @transform_3, window_bounds = array<i64: 16, 8>}, {pipeline_mode = #tpu.pipeline_mode<synchronous>, transform_indices = @transform_4, window_bounds = array<i64: 1, 8>}, {transform_indices = @transform_5, window_bounds = array<i64: 8, 8>}]} {
    %c0 = arith.constant 0 : index
    %c0_0 = arith.constant 0 : index
    %0 = vector.load %arg1[%c0, %c0_0] : memref<8x8xf32, #tpu.memory_space<vmem>>, vector<8x8xf32>
    %c0_1 = arith.constant 0 : index
    %c0_2 = arith.constant 0 : index
    %1 = vector.load %arg2[%c0_1, %c0_2] : memref<8x16xf32, #tpu.memory_space<vmem>>, vector<8x16xf32>
    %cst = arith.constant dense<0.000000e+00> : vector<8x16xf32>
    %2 = tpu.matmul %0, %1, %cst {dimension_numbers = #tpu.dot_dimension_numbers<[1], [0], [0], [1], [0, 0, 1, 1], [], []>} : vector<8x8xf32>, vector<8x16xf32>, vector<8x16xf32> -> vector<8x16xf32>
    %c0_3 = arith.constant 0 : index
    %c0_4 = arith.constant 0 : index
    %3 = vector.load %arg3[%c0_3, %c0_4] : memref<1x16xf32, #tpu.memory_space<vmem>>, vector<1x16xf32>
    %4 = vector.broadcast %3 : vector<1x16xf32> to vector<8x16xf32>
    %5 = arith.addf %2, %4 : vector<8x16xf32>
    %cst_5 = arith.constant 0.000000e+00 : f32
    %6 = vector.broadcast %cst_5 : f32 to vector<8x16xf32>
    %7 = arith.maximumf %5, %6 : vector<8x16xf32>
    %c0_6 = arith.constant 0 : index
    %c0_7 = arith.constant 0 : index
    %8 = vector.load %arg4[%c0_6, %c0_7] : memref<16x8xf32, #tpu.memory_space<vmem>>, vector<16x8xf32>
    %cst_8 = arith.constant dense<0.000000e+00> : vector<8x8xf32>
    %9 = tpu.matmul %7, %8, %cst_8 {dimension_numbers = #tpu.dot_dimension_numbers<[1], [0], [0], [1], [0, 0, 1, 1], [], []>} : vector<8x16xf32>, vector<16x8xf32>, vector<8x8xf32> -> vector<8x8xf32>
    %c0_9 = arith.constant 0 : index
    %c0_10 = arith.constant 0 : index
    %10 = vector.load %arg5[%c0_9, %c0_10] : memref<1x8xf32, #tpu.memory_space<vmem>>, vector<1x8xf32>
    %11 = vector.broadcast %10 : vector<1x8xf32> to vector<8x8xf32>
    %12 = arith.addf %9, %11 : vector<8x8xf32>
    %c0_11 = arith.constant 0 : index
    %c0_12 = arith.constant 0 : index
    %13 = vector.load %arg6[%c0_11, %c0_12] : memref<8x8xf32, #tpu.memory_space<vmem>>, vector<8x8xf32>
    tpu.vector_store %arg6[%c0_11, %c0_12], %12 {strides = array<i32>} : memref<8x8xf32, #tpu.memory_space<vmem>>, vector<8x8xf32>,
    return
  }
  func.func @transform_0(%arg0: i32) -> (i32, i32) {
    %c0_i32 = arith.constant 0 : i32
    %c0_i32_0 = arith.constant 0 : i32
    return %arg0, %c0_i32 : i32, i32
  }
  func.func @transform_1(%arg0: i32) -> (i32, i32) {
    %c0_i32 = arith.constant 0 : i32
    %c0_i32_0 = arith.constant 0 : i32
    %c0_i32_1 = arith.constant 0 : i32
    return %c0_i32, %c0_i32_0 : i32, i32
  }
  func.func @transform_2(%arg0: i32) -> (i32, i32) {
    %c0_i32 = arith.constant 0 : i32
    %c0_i32_0 = arith.constant 0 : i32
    %c0_i32_1 = arith.constant 0 : i32
    return %c0_i32, %c0_i32_0 : i32, i32
  }
  func.func @transform_3(%arg0: i32) -> (i32, i32) {
    %c0_i32 = arith.constant 0 : i32
    %c0_i32_0 = arith.constant 0 : i32
    %c0_i32_1 = arith.constant 0 : i32
    return %c0_i32, %c0_i32_0 : i32, i32
  }
  func.func @transform_4(%arg0: i32) -> (i32, i32) {
    %c0_i32 = arith.constant 0 : i32
    %c0_i32_0 = arith.constant 0 : i32
    %c0_i32_1 = arith.constant 0 : i32
    return %c0_i32, %c0_i32_0 : i32, i32
  }
  func.func @transform_5(%arg0: i32) -> (i32, i32) {
    %c0_i32 = arith.constant 0 : i32
    %c0_i32_0 = arith.constant 0 : i32
    return %arg0, %c0_i32 : i32, i32
  }
}

</mosaic_0001>

<llo_original>
// kernel: tpu_custom_call.1
$region0: #{tpu_custom_call.1}
  #allocation0 [shape = 'u32[]', space=smem, size = 0x4, offset = 0x4, fixed_abs, tag = 'smem constant byte address 0x4 - core index']
  #allocation1 [shape = 'u32[72,128]{1,0:T(1,128)}', space=vmem, size = 0x9000, scoped, tag = 'internal scratch']
  %s0 = inlined_call_operand.vmem [shape: f32[8,8], index: 0, kind: input, shape index: {}]
  %s1 = inlined_call_operand.vmem [shape: f32[8,16], index: 1, kind: input, shape index: {}]
  %s2 = inlined_call_operand.vmem [shape: f32[1,16], index: 2, kind: input, shape index: {}]
  %s3 = inlined_call_operand.vmem [shape: f32[16,8], index: 3, kind: input, shape index: {}]
  %s4 = inlined_call_operand.vmem [shape: f32[1,8], index: 4, kind: input, shape index: {}]
  %s5 = inlined_call_operand.hbm [shape: f32[8,8], index: 5, kind: output, shape index: {}]
  %s6 = sld [smem:[#allocation0]]
  $region30: #{tpu_custom_call.1} parent=0
    _
  %s8 = ssub.s32 1, %s6
  %s9 = scalar_select 0, %s8, %s6
  $region1: #{tpu_custom_call.1} parent=0
    #allocation2 [shape = 'u8[4096]{0}', space=vmem, size = 0x1000, scoped, tag = 'output window, operand 0, single buffered']
    #allocation3 [shape = 's32[1]{0}', space=sflag, size = 0x4, scoped, tag = 'scoped memory for tpu_custom_call.1']
    %10 = vsyncpa [#allocation3], 0
    // Predicated region
    $region2: #{tpu_custom_call.1} parent=1 // pred_check
      _
    $region3: #{tpu_custom_call.1} parent=1 // pred_check_branch
      %12 = sbr.rel (0) target = $region5
    $region4: #{tpu_custom_call.1} parent=1 // pred_region
      _
    $region5: #{tpu_custom_call.1} parent=1 // pred_fallthru
      _
    // Predicated region
    $region6: #{tpu_custom_call.1} parent=1 // pred_check
      _
    $region7: #{tpu_custom_call.1} parent=1 // pred_check_branch
      %14 = sbr.rel (0) target = $region9
    $region8: #{tpu_custom_call.1} parent=1 // pred_region
      _
    $region9: #{tpu_custom_call.1} parent=1 // pred_fallthru
      _
    // Predicated region
    $region10: #{tpu_custom_call.1} parent=1 // pred_check
      _
    $region11: #{tpu_custom_call.1} parent=1 // pred_check_branch
      %16 = sbr.rel (0) target = $region13
    $region12: #{tpu_custom_call.1} parent=1 // pred_region
      _
    $region13: #{tpu_custom_call.1} parent=1 // pred_fallthru
      _
    // Predicated region
    $region14: #{tpu_custom_call.1} parent=1 // pred_check
      _
    $region15: #{tpu_custom_call.1} parent=1 // pred_check_branch
      %18 = sbr.rel (0) target = $region17
    $region16: #{tpu_custom_call.1} parent=1 // pred_region
      _
    $region17: #{tpu_custom_call.1} parent=1 // pred_fallthru
      _
    // Predicated region
    $region18: #{tpu_custom_call.1} parent=1 // pred_check
      _
    $region19: #{tpu_custom_call.1} parent=1 // pred_check_branch
      %20 = sbr.rel (0) target = $region21
    $region20: #{tpu_custom_call.1} parent=1 // pred_region
      _
    $region21: #{tpu_custom_call.1} parent=1 // pred_fallthru
      _
    %v21 = vld [vmem:[%s0] sm:$0xff]
    %v22 = vld [vmem:[%s1] sm:$0xff]
    %v23 = vld [vmem:[%s2] sm:$0x1]
    %v25 = vperm.slane %v23, 0
    %vm27 = vcmask 64512
    %v29 = vsel %vm27, %v21, 0
    %31 = vmatpush.msra.mxu0 0.0
    %32 = vmatpush.msra.mxu0 0.0
    %33 = vmatpush.msra.mxu0 0.0
    %34 = vmatpush.msra.mxu0 0.0
    %35 = vmatpush.msra.mxu0 0.0
    %36 = vmatpush.msra.mxu0 0.0
    %37 = vmatpush.msra.mxu0 0.0
    %38 = vmatpush.msra.mxu0 0.0
    %39 = vmatpush.msra.mxu0 0.0
    %40 = vmatpush.msra.mxu0 0.0
    %41 = vmatpush.msra.mxu0 0.0
    %42 = vmatpush.msra.mxu0 0.0
    %43 = vmatpush.msra.mxu0 0.0
    %44 = vmatpush.msra.mxu0 0.0
    %45 = vmatpush.msra.mxu0 0.0
    %46 = vmatpush.msra.mxu0 %v22
    %47 = vmatmul.f32.gmra.mxu0 %v29
    %v48 = vpop.f32.mrf.mxu0
    %v49 = vadd.f32 %v25, %v48
    %50 = vdwg.mxu0
    %v51 = vmax.f32 %v49, 0.0
    %v52 = vld [vmem:[%s3] sm:$0xff]
    %v53 = vld [vmem:[%s3 + $0x8] sm:$0xff]
    %v54 = vld [vmem:[%s4] sm:$0x1]
    %v56 = vperm.slane %v54, 0
    %vm58 = vcmask 130048
    %v60 = vsel %vm58, %v51, 0
    %62 = vmatpush.msra.mxu0 0.0
    %63 = vmatpush.msra.mxu0 0.0
    %64 = vmatpush.msra.mxu0 0.0
    %65 = vmatpush.msra.mxu0 0.0
    %66 = vmatpush.msra.mxu0 0.0
    %67 = vmatpush.msra.mxu0 0.0
    %68 = vmatpush.msra.mxu0 0.0
    %69 = vmatpush.msra.mxu0 0.0
    %70 = vmatpush.msra.mxu0 0.0
    %71 = vmatpush.msra.mxu0 0.0
    %72 = vmatpush.msra.mxu0 0.0
    %73 = vmatpush.msra.mxu0 0.0
    %74 = vmatpush.msra.mxu0 0.0
    %75 = vmatpush.msra.mxu0 0.0
    %76 = vmatpush.msra.mxu0 %v53
    %77 = vmatpush.msra.mxu0 %v52
    %78 = vmatmul.f32.gmra.mxu0 %v60
    %v79 = vpop.f32.mrf.mxu0
    %v80 = vadd.f32 %v56, %v79
    %81 = vdwg.mxu0
    %82 = vst.msk [vmem:[#allocation2] sm:$0xff] %vm27, %v80
    // Predicated region
    $region22: #{tpu_custom_call.1} parent=1 // pred_check
      _
    $region23: #{tpu_custom_call.1} parent=1 // pred_check_branch
      %84 = sbr.rel (0) target = $region25
    $region24: #{tpu_custom_call.1} parent=1 // pred_region
      %86 = vsyncadd [#allocation3], 0
      %s88 = sshll.u32 [#allocation2], 4
      %s89 = int_to_ptr.vmem [resolvable:$true] %s88
      %s90 = sshll.u32 %s5, 4
      %s91 = int_to_ptr.hbm [resolvable:$true] %s90
      %93 = dma.vmem_to_hbm [thread:$0]  %s89, 128, %s91, [#allocation3]
    $region25: #{tpu_custom_call.1} parent=1 // pred_fallthru
      _
    // Predicated region
    $region26: #{tpu_custom_call.1} parent=1 // pred_check
      _
    $region27: #{tpu_custom_call.1} parent=1 // pred_check_branch
      %95 = sbr.rel (0) target = $region29
    $region28: #{tpu_custom_call.1} parent=1 // pred_region
      %97 = dma.done [#allocation3], 128
    $region29: #{tpu_custom_call.1} parent=1 // pred_fallthru
      _
    %98 = vsyncpa [#allocation3], 1

</llo_original>
